<compile_context>
chip_gen: v7x
topology: tpu7x:2x2x1
jax: 0.10.0
libtpu: 0.0.40
codegen_flags: <defaults>
</compile_context>

<pallas_src>
import jax
import jax.numpy as jnp
from jax.experimental import pallas as pl
from jax.experimental.pallas import tpu as pltpu


# --------------------------------------------------------------------------- utils
def _round_up(v, m):
    return ((v + m - 1) // m) * m


def _pad2d(x, rows, cols):
    return jnp.pad(x, ((0, rows - x.shape[0]), (0, cols - x.shape[1])))


def _physical_vmem_bytes():
    try:
        return int(pltpu.get_tpu_info().vmem_capacity_bytes)
    except Exception:
        return 64 * 1024 * 1024          # conservative default: v7x per-TC VMEM


def _vmem_budget_bytes():
    phys = _physical_vmem_bytes()
    # Leave ~25% headroom for Pallas-internal scratch / pipeline buffers:
    #   v7x (64 MiB) -> 48 MiB, v5e/v6e (128 MiB) -> 96 MiB (capped at 100 MiB).
    return int(min(phys - phys // 4, 100 * 1024 * 1024))


def _pick_tile(n128, cap):
    """Largest power-of-two multiple of 128 (<= cap) whose node-axis padding waste
    stays below ~12.5% (bounded padding of the N^2 operand)."""
    for t in (1024, 512, 256, 128):
        if t > cap or t > n128:
            continue
        if _round_up(n128, t) - n128 <= max(n128 // 8, 128):
            return t
    return 128


def _fused_need_bytes(n_pad, s_width, h_pad, apply_w1):
    bf16, f32 = 2, 4
    need = n_pad * n_pad * bf16                                   # Â resident
    need += n_pad * s_width * bf16                                # X (or X@W1)
    need += (s_width * h_pad * bf16 if apply_w1 else 0)           # W1
    need += h_pad * h_pad * bf16 + 2 * h_pad * f32                # W2 + biases
    need += n_pad * max(s_width, h_pad) * f32                     # layer-1 accumulator
    need += n_pad * h_pad * (bf16 + 2 * f32)                      # h1 + layer-2 acc + h2
    need += 8 * h_pad * f32                                       # pooled output
    return need


def _layer_need_bytes(tm, tk, n_pad, stream_w, h_pad, weight_bytes, out_tile_bytes,
                      resident_act):
    bf16, f32 = 2, 4
    need = 2 * tm * tk * bf16                                     # Â tile (2 buffers)
    need += (2 * n_pad * stream_w * bf16) if resident_act else (2 * tk * stream_w * bf16)
    need += 2 * (weight_bytes + h_pad * f32)                      # weights + bias (2 bufs)
    need += tm * stream_w * f32                                   # f32 accumulator scratch
    need += 2 * out_tile_bytes                                    # output tile (2 bufs)
    return need


# --------------------------------------------------------------------------- kernels
def _make_fused_kernel(apply_w1, n_true):
    """Single-pass: layer1 + layer2 + masked mean-pool numerator (everything resident)."""
    def body(a, s, w1, b1, w2, b2):
        acc1 = jnp.dot(a, s, preferred_element_type=jnp.float32)
        if apply_w1:                                              # (Â@X)@W1 ordering
            acc1 = jnp.dot(acc1.astype(w1.dtype), w1, preferred_element_type=jnp.float32)
        h1 = jnp.maximum(acc1 + b1, 0.0).astype(jnp.bfloat16)
        acc2 = jnp.dot(a, h1, preferred_element_type=jnp.float32)
        h2 = jnp.dot(acc2.astype(w2.dtype), w2, preferred_element_type=jnp.float32) + b2
        h2 = jnp.maximum(h2, 0.0)
        rows = jax.lax.broadcasted_iota(jnp.int32, h2.shape, 0)
        h2 = jnp.where(rows < n_true, h2, 0.0)                    # drop padded rows
        return jnp.sum(h2, axis=0, keepdims=True)

    if apply_w1:
        def kernel(a_ref, s_ref, w1_ref, b1_ref, w2_ref, b2_ref, hg_ref):
            hg_ref[...] = body(a_ref[...], s_ref[...], w1_ref[...], b1_ref[...],
                               w2_ref[...], b2_ref[...])
    else:
        def kernel(a_ref, s_ref, b1_ref, w2_ref, b2_ref, hg_ref):
            hg_ref[...] = body(a_ref[...], s_ref[...], None, b1_ref[...],
                               w2_ref[...], b2_ref[...])
    return kernel


def _make_layer1_kernel(apply_w1, resident_s, tk):
    """h1_row_tile = relu( (sum_k Â[i,k] @ S[k]) [@ W1] + b1 ); S = X or X@W1."""
    def kernel(*refs):
        if apply_w1:
            a_ref, s_ref, w1_ref, b1_ref, h1_ref, acc_ref = refs
        else:
            a_ref, s_ref, b1_ref, h1_ref, acc_ref = refs
            w1_ref = None
        k = pl.program_id(1)

        @pl.when(k == 0)
        def _():
            acc_ref[...] = jnp.zeros_like(acc_ref)

        if resident_s:
            start = pl.multiple_of(k * tk, 128)
            s_blk = s_ref[pl.ds(start, tk), :]
        else:
            s_blk = s_ref[...]
        acc_ref[...] += jnp.dot(a_ref[...], s_blk, preferred_element_type=jnp.float32)

        @pl.when(k == pl.num_programs(1) - 1)
        def _():
            acc = acc_ref[...]
            if apply_w1:
                acc = jnp.dot(acc.astype(w1_ref.dtype), w1_ref[...],
                              preferred_element_type=jnp.float32)
            h1_ref[...] = jnp.maximum(acc + b1_ref[...], 0.0).astype(h1_ref.dtype)

    return kernel


def _make_layer2_kernel(tm, tk, n_true, resident_h1):
    """Layer-2 contraction + epilogue; emits a masked pooled partial sum per row tile
    (disjoint output blocks -> row axis stays 'parallel' for megacore)."""
    def kernel(a_ref, h1_ref, w2_ref, b2_ref, psum_ref, acc_ref):
        i = pl.program_id(0)
        k = pl.program_id(1)

        @pl.when(k == 0)
        def _():
            acc_ref[...] = jnp.zeros_like(acc_ref)

        if resident_h1:
            start = pl.multiple_of(k * tk, 128)
            h1_blk = h1_ref[pl.ds(start, tk), :]
        else:
            h1_blk = h1_ref[...]
        acc_ref[...] += jnp.dot(a_ref[...], h1_blk, preferred_element_type=jnp.float32)

        @pl.when(k == pl.num_programs(1) - 1)
        def _():
            h2 = jnp.dot(acc_ref[...].astype(w2_ref.dtype), w2_ref[...],
                         preferred_element_type=jnp.float32) + b2_ref[...]
            h2 = jnp.maximum(h2, 0.0)
            rows = i * tm + jax.lax.broadcasted_iota(jnp.int32, h2.shape, 0)
            h2 = jnp.where(rows < n_true, h2, 0.0)                # mask padded rows
            part = jnp.sum(h2, axis=0, keepdims=True)             # (1, H)
            sub = jax.lax.broadcasted_iota(jnp.int32, (8, h2.shape[1]), 0)
            psum_ref[...] = jnp.where(sub == 0, part, 0.0)[None]  # (1, 8, H) block

    return kernel


# --------------------------------------------------------------------------- wrapper
def gcn_classifier(a_hat, x, w1, b1, w2, b2, wc, bc, *, force_tiled=False):
    n = a_hat.shape[0]
    f = x.shape[1]
    h = w1.shape[1]

    n128 = _round_up(n, 128)
    f_pad = _round_up(f, 128)
    h_pad = _round_up(h, 128)
    budget = _vmem_budget_bytes()

    # Matmul association: keep the N^2-sized product at width min(F, H).
    apply_w1 = f_pad <= h_pad
    if apply_w1:
        s = x.astype(jnp.bfloat16)                                 # stream X, W1 in epilogue
        s_width = f_pad
    else:
        s = jnp.dot(x.astype(jnp.float32), w1.astype(jnp.float32)).astype(jnp.bfloat16)
        s_width = h_pad

    b1_p = _pad2d(jnp.asarray(b1, jnp.float32).reshape(1, -1), 1, h_pad)
    b2_p = _pad2d(jnp.asarray(b2, jnp.float32).reshape(1, -1), 1, h_pad)
    w2_p = _pad2d(w2.astype(jnp.bfloat16), h_pad, h_pad)
    w1_p = _pad2d(w1.astype(jnp.bfloat16), f_pad, h_pad) if apply_w1 else None

    use_fused = ((not force_tiled) and n128 <= 2048
                 and 2 * _fused_need_bytes(n128, s_width, h_pad, apply_w1) <= budget)

    if use_fused:
        # ---- fully fused, VMEM-resident single pass ---------------------------
        n_pad = n128
        a_p = _pad2d(a_hat.astype(jnp.bfloat16), n_pad, n_pad)
        s_p = _pad2d(s, n_pad, s_width)

        in_specs = [pl.BlockSpec((n_pad, n_pad), lambda i: (0, 0)),
                    pl.BlockSpec((n_pad, s_width), lambda i: (0, 0))]
        operands = [a_p, s_p]
        if apply_w1:
            in_specs.append(pl.BlockSpec((f_pad, h_pad), lambda i: (0, 0)))
            operands.append(w1_p)
        in_specs += [pl.BlockSpec((1, h_pad), lambda i: (0, 0)),
                     pl.BlockSpec((h_pad, h_pad), lambda i: (0, 0)),
                     pl.BlockSpec((1, h_pad), lambda i: (0, 0))]
        operands += [b1_p, w2_p, b2_p]

        hg_sum = pl.pallas_call(
            _make_fused_kernel(apply_w1, n),
            grid=(1,),
            in_specs=in_specs,
            out_specs=pl.BlockSpec((1, h_pad), lambda i: (0, 0)),
            out_shape=jax.ShapeDtypeStruct((1, h_pad), jnp.float32),
            compiler_params=pltpu.CompilerParams(
                dimension_semantics=("arbitrary",),
                vmem_limit_bytes=budget),
        )(*operands)
    else:
        # ---- tiled two-kernel path for large graphs ----------------------------
        tk = _pick_tile(n128, 1024)          # contraction tile (lane axis of Â block)
        tm = min(tk, 512)                    # row tile (sublane axis of Â block)
        n_pad = _round_up(n128, tk)          # tm | tk | n_pad (powers of two x 128)
        grid = (n_pad // tm, n_pad // tk)
        ni = grid[0]

        a_p = _pad2d(a_hat.astype(jnp.bfloat16), n_pad, n_pad)
        s_p = _pad2d(s, n_pad, s_width)

        w1_bytes = (f_pad * h_pad * 2) if apply_w1 else 0
        resident_s = _layer_need_bytes(tm, tk, n_pad, s_width, h_pad, w1_bytes,
                                       2 * tm * h_pad, True) <= budget
        resident_h1 = _layer_need_bytes(tm, tk, n_pad, h_pad, h_pad, h_pad * h_pad * 2,
                                        4 * 8 * h_pad, True) <= budget

        # layer 1: h1 = relu(Â @ X @ W1 + b1)
        in_specs = [pl.BlockSpec((tm, tk), lambda i, k: (i, k))]
        if resident_s:
            in_specs.append(pl.BlockSpec((n_pad, s_width), lambda i, k: (0, 0)))
        else:
            in_specs.append(pl.BlockSpec((tk, s_width), lambda i, k: (k, 0)))
        operands = [a_p, s_p]
        if apply_w1:
            in_specs.append(pl.BlockSpec((f_pad, h_pad), lambda i, k: (0, 0)))
            operands.append(w1_p)
        in_specs.append(pl.BlockSpec((1, h_pad), lambda i, k: (0, 0)))
        operands.append(b1_p)

        h1 = pl.pallas_call(
            _make_layer1_kernel(apply_w1, resident_s, tk),
            grid=grid,
            in_specs=in_specs,
            out_specs=pl.BlockSpec((tm, h_pad), lambda i, k: (i, 0)),
            out_shape=jax.ShapeDtypeStruct((n_pad, h_pad), jnp.bfloat16),
            scratch_shapes=[pltpu.VMEM((tm, s_width), jnp.float32)],
            compiler_params=pltpu.CompilerParams(
                dimension_semantics=("parallel", "arbitrary"),
                vmem_limit_bytes=budget),
        )(*operands)

        # layer 2 + masked pooled partial sums (one (8, H) slab per row tile)
        if resident_h1:
            h1_spec = pl.BlockSpec((n_pad, h_pad), lambda i, k: (0, 0))
        else:
            h1_spec = pl.BlockSpec((tk, h_pad), lambda i, k: (k, 0))

        psums = pl.pallas_call(
            _make_layer2_kernel(tm, tk, n, resident_h1),
            grid=grid,
            in_specs=[pl.BlockSpec((tm, tk), lambda i, k: (i, k)),
                      h1_spec,
                      pl.BlockSpec((h_pad, h_pad), lambda i, k: (0, 0)),
                      pl.BlockSpec((1, h_pad), lambda i, k: (0, 0))],
            out_specs=pl.BlockSpec((1, 8, h_pad), lambda i, k: (i, 0, 0)),
            out_shape=jax.ShapeDtypeStruct((ni, 8, h_pad), jnp.float32),
            scratch_shapes=[pltpu.VMEM((tm, h_pad), jnp.float32)],
            compiler_params=pltpu.CompilerParams(
                dimension_semantics=("parallel", "arbitrary"),
                vmem_limit_bytes=budget),
        )(a_p, h1, w2_p, b2_p)
        hg_sum = psums[:, 0, :].sum(axis=0, keepdims=True)

    # tiny finalize (mean pool + classifier head) in JAX
    hg = (hg_sum * (1.0 / float(n)))[:, :h]
    logits = jnp.dot(hg, wc.astype(jnp.float32)) + jnp.asarray(bc, jnp.float32).reshape(1, -1)
    return logits, hg


# --------------------------------------------------------------------------- glue / test
def build_normalized_adjacency(key, n_nodes):
    """Deterministic random graph -> DGL-style norm='both' dense operator."""
    raw = jax.random.bernoulli(key, p=0.2, shape=(n_nodes, n_nodes)).astype(jnp.float32)
    adj = jnp.maximum(raw, raw.T)                      # symmetrize (undirected)
    adj = jnp.maximum(adj, jnp.eye(n_nodes))           # add self loops
    out_deg = jnp.maximum(adj.sum(axis=1), 1.0)        # out-degree of src (clamped)
    in_deg = jnp.maximum(adj.sum(axis=0), 1.0)         # in-degree of dst (clamped)
    # Â[v, u] = A[u, v] * d_out(u)^{-1/2} * d_in(v)^{-1/2}
    a_hat = (in_deg[:, None] ** -0.5) * adj.T * (out_deg[None, :] ** -0.5)
    return a_hat.astype(jnp.float32)


def reference_forward(a_hat, x, w1, b1, w2, b2, wc, bc):
    h = jnp.maximum(a_hat @ x @ w1 + b1, 0.0)
    h = jnp.maximum(a_hat @ h @ w2 + b2, 0.0)
    hg = jnp.mean(h, axis=0, keepdims=True)
    return hg @ wc + bc, hg


if __name__ == "__main__":
    def run_case(n_nodes, in_feats, n_hidden, n_classes, case_key):
        k_adj, k_x, k_w1, k_b1, k_w2, k_b2, k_wc = jax.random.split(case_key, 7)
        a_hat = build_normalized_adjacency(k_adj, n_nodes)
        x = jax.random.normal(k_x, (n_nodes, in_feats), dtype=jnp.float32)
        w1 = 0.1 * jax.random.normal(k_w1, (in_feats, n_hidden), dtype=jnp.float32)
        b1 = 0.1 * jax.random.normal(k_b1, (1, n_hidden), dtype=jnp.float32)
        w2 = 0.1 * jax.random.normal(k_w2, (n_hidden, n_hidden), dtype=jnp.float32)
        b2 = 0.1 * jax.random.normal(k_b2, (1, n_hidden), dtype=jnp.float32)
        wc = 0.1 * jax.random.normal(k_wc, (n_hidden, n_classes), dtype=jnp.float32)
        bc = jnp.zeros((1, n_classes), dtype=jnp.float32)

        ref_logits, ref_hg = reference_forward(a_hat, x, w1, b1, w2, b2, wc, bc)
        # bf16 streaming of Â / activations / weights -> compare against the f32
        # reference with a tolerance covering the bf16 quantization.
        for force_tiled in (False, True):
            logits, hg = gcn_classifier(a_hat, x, w1, b1, w2, b2, wc, bc,
                                        force_tiled=force_tiled)
            jax.block_until_ready((logits, hg))
            assert jnp.allclose(logits, ref_logits, atol=2e-2, rtol=2e-2), \
                ("logits mismatch", force_tiled)
            assert jnp.allclose(hg, ref_hg, atol=2e-2, rtol=2e-2), \
                ("hg mismatch", force_tiled)

    key = jax.random.PRNGKey(0)
    k1, k2 = jax.random.split(key)
    run_case(n_nodes=32, in_feats=16, n_hidden=32, n_classes=4, case_key=k1)   # F <= H
    run_case(n_nodes=50, in_feats=200, n_hidden=32, n_classes=5, case_key=k2)  # F > H
    print("KERNEL_OK")
</pallas_src>

<mosaic_0001>
module attributes {stable_mosaic.version = 11 : i64} {
  func.func @kernel(%arg0: i32, %arg1: memref<128x128xbf16, #tpu.memory_space<vmem>>, %arg2: memref<128x128xbf16, #tpu.memory_space<vmem>>, %arg3: memref<128x128xbf16, #tpu.memory_space<vmem>>, %arg4: memref<1x128xf32, #tpu.memory_space<vmem>>, %arg5: memref<128x128xbf16, #tpu.memory_space<vmem>>, %arg6: memref<1x128xf32, #tpu.memory_space<vmem>>, %arg7: memref<1x128xf32, #tpu.memory_space<vmem>>) attributes {dimension_semantics = [#tpu.dimension_semantics<arbitrary>], iteration_bounds = array<i64: 1>, scalar_prefetch = 0 : i64, scratch_operands = 0 : i64, tpu.core_type = #tpu.core_type<tc>, window_params = [{pipeline_mode = #tpu.pipeline_mode<synchronous>, transform_indices = @transform_0, window_bounds = array<i64: 128, 128>}, {pipeline_mode = #tpu.pipeline_mode<synchronous>, transform_indices = @transform_1, window_bounds = array<i64: 128, 128>}, {pipeline_mode = #tpu.pipeline_mode<synchronous>, transform_indices = @transform_2, window_bounds = array<i64: 128, 128>}, {pipeline_mode = #tpu.pipeline_mode<synchronous>, transform_indices = @transform_3, window_bounds = array<i64: 1, 128>}, {pipeline_mode = #tpu.pipeline_mode<synchronous>, transform_indices = @transform_4, window_bounds = array<i64: 128, 128>}, {pipeline_mode = #tpu.pipeline_mode<synchronous>, transform_indices = @transform_5, window_bounds = array<i64: 1, 128>}, {pipeline_mode = #tpu.pipeline_mode<synchronous>, transform_indices = @transform_6, window_bounds = array<i64: 1, 128>}]} {
    %c0 = arith.constant 0 : index
    %c0_0 = arith.constant 0 : index
    %0 = vector.load %arg1[%c0, %c0_0] : memref<128x128xbf16, #tpu.memory_space<vmem>>, vector<128x128xbf16>
    %c0_1 = arith.constant 0 : index
    %c0_2 = arith.constant 0 : index
    %1 = vector.load %arg2[%c0_1, %c0_2] : memref<128x128xbf16, #tpu.memory_space<vmem>>, vector<128x128xbf16>
    %c0_3 = arith.constant 0 : index
    %c0_4 = arith.constant 0 : index
    %2 = vector.load %arg3[%c0_3, %c0_4] : memref<128x128xbf16, #tpu.memory_space<vmem>>, vector<128x128xbf16>
    %c0_5 = arith.constant 0 : index
    %c0_6 = arith.constant 0 : index
    %3 = vector.load %arg4[%c0_5, %c0_6] : memref<1x128xf32, #tpu.memory_space<vmem>>, vector<1x128xf32>
    %c0_7 = arith.constant 0 : index
    %c0_8 = arith.constant 0 : index
    %4 = vector.load %arg5[%c0_7, %c0_8] : memref<128x128xbf16, #tpu.memory_space<vmem>>, vector<128x128xbf16>
    %c0_9 = arith.constant 0 : index
    %c0_10 = arith.constant 0 : index
    %5 = vector.load %arg6[%c0_9, %c0_10] : memref<1x128xf32, #tpu.memory_space<vmem>>, vector<1x128xf32>
    %cst = arith.constant dense<0.000000e+00> : vector<128x128xf32>
    %6 = tpu.matmul %0, %1, %cst {dimension_numbers = #tpu.dot_dimension_numbers<[1], [0], [0], [1], [0, 0, 1, 1], [], []>} : vector<128x128xbf16>, vector<128x128xbf16>, vector<128x128xf32> -> vector<128x128xf32>
    %7 = arith.truncf %6 : vector<128x128xf32> to vector<128x128xbf16>
    %cst_11 = arith.constant dense<0.000000e+00> : vector<128x128xf32>
    %8 = tpu.matmul %7, %2, %cst_11 {dimension_numbers = #tpu.dot_dimension_numbers<[1], [0], [0], [1], [0, 0, 1, 1], [], []>} : vector<128x128xbf16>, vector<128x128xbf16>, vector<128x128xf32> -> vector<128x128xf32>
    %9 = vector.broadcast %3 : vector<1x128xf32> to vector<128x128xf32>
    %10 = arith.addf %8, %9 : vector<128x128xf32>
    %cst_12 = arith.constant 0.000000e+00 : f32
    %11 = vector.broadcast %cst_12 : f32 to vector<128x128xf32>
    %12 = arith.maximumf %10, %11 : vector<128x128xf32>
    %13 = arith.truncf %12 : vector<128x128xf32> to vector<128x128xbf16>
    %cst_13 = arith.constant dense<0.000000e+00> : vector<128x128xf32>
    %14 = tpu.matmul %0, %13, %cst_13 {dimension_numbers = #tpu.dot_dimension_numbers<[1], [0], [0], [1], [0, 0, 1, 1], [], []>} : vector<128x128xbf16>, vector<128x128xbf16>, vector<128x128xf32> -> vector<128x128xf32>
    %15 = arith.truncf %14 : vector<128x128xf32> to vector<128x128xbf16>
    %cst_14 = arith.constant dense<0.000000e+00> : vector<128x128xf32>
    %16 = tpu.matmul %15, %4, %cst_14 {dimension_numbers = #tpu.dot_dimension_numbers<[1], [0], [0], [1], [0, 0, 1, 1], [], []>} : vector<128x128xbf16>, vector<128x128xbf16>, vector<128x128xf32> -> vector<128x128xf32>
    %17 = vector.broadcast %5 : vector<1x128xf32> to vector<128x128xf32>
    %18 = arith.addf %16, %17 : vector<128x128xf32>
    %cst_15 = arith.constant 0.000000e+00 : f32
    %19 = vector.broadcast %cst_15 : f32 to vector<128x128xf32>
    %20 = arith.maximumf %18, %19 : vector<128x128xf32>
    %21 = tpu.iota {dimensions = array<i32: 0>} : vector<128x128xi32>
    %c32_i32 = arith.constant 32 : i32
    %22 = vector.broadcast %c32_i32 : i32 to vector<128x128xi32>
    %23 = arith.cmpi slt, %21, %22 : vector<128x128xi32>
    %cst_16 = arith.constant 0.000000e+00 : f32
    %24 = vector.broadcast %cst_16 : f32 to vector<128x128xf32>
    %25 = arith.select %23, %20, %24 : vector<128x128xi1>, vector<128x128xf32>
    %cst_17 = arith.constant dense<0.000000e+00> : vector<128xf32>
    %26 = vector.multi_reduction <add>, %25, %cst_17 [0] : vector<128x128xf32> to vector<128xf32>
    %27 = vector.shape_cast %26 : vector<128xf32> to vector<1x128xf32>
    %c0_18 = arith.constant 0 : index
    %c0_19 = arith.constant 0 : index
    %28 = vector.load %arg7[%c0_18, %c0_19] : memref<1x128xf32, #tpu.memory_space<vmem>>, vector<1x128xf32>
    tpu.vector_store %arg7[%c0_18, %c0_19], %27 {strides = array<i32>} : memref<1x128xf32, #tpu.memory_space<vmem>>, vector<1x128xf32>,
    return
  }
  func.func @transform_0(%arg0: i32) -> (i32, i32) {
    %c0_i32 = arith.constant 0 : i32
    %c0_i32_0 = arith.constant 0 : i32
    %c0_i32_1 = arith.constant 0 : i32
    return %c0_i32, %c0_i32_0 : i32, i32
  }
  func.func @transform_1(%arg0: i32) -> (i32, i32) {
    %c0_i32 = arith.constant 0 : i32
    %c0_i32_0 = arith.constant 0 : i32
    %c0_i32_1 = arith.constant 0 : i32
    return %c0_i32, %c0_i32_0 : i32, i32
  }
  func.func @transform_2(%arg0: i32) -> (i32, i32) {
    %c0_i32 = arith.constant 0 : i32
    %c0_i32_0 = arith.constant 0 : i32
    %c0_i32_1 = arith.constant 0 : i32
    return %c0_i32, %c0_i32_0 : i32, i32
  }
  func.func @transform_3(%arg0: i32) -> (i32, i32) {
    %c0_i32 = arith.constant 0 : i32
    %c0_i32_0 = arith.constant 0 : i32
    %c0_i32_1 = arith.constant 0 : i32
    return %c0_i32, %c0_i32_0 : i32, i32
  }
  func.func @transform_4(%arg0: i32) -> (i32, i32) {
    %c0_i32 = arith.constant 0 : i32
    %c0_i32_0 = arith.constant 0 : i32
    %c0_i32_1 = arith.constant 0 : i32
    return %c0_i32, %c0_i32_0 : i32, i32
  }
  func.func @transform_5(%arg0: i32) -> (i32, i32) {
    %c0_i32 = arith.constant 0 : i32
    %c0_i32_0 = arith.constant 0 : i32
    %c0_i32_1 = arith.constant 0 : i32
    return %c0_i32, %c0_i32_0 : i32, i32
  }
  func.func @transform_6(%arg0: i32) -> (i32, i32) {
    %c0_i32 = arith.constant 0 : i32
    %c0_i32_0 = arith.constant 0 : i32
    %c0_i32_1 = arith.constant 0 : i32
    return %c0_i32, %c0_i32_0 : i32, i32
  }
}

</mosaic_0001>

<llo_original>
// kernel: tpu_custom_call.1
$region0: #{tpu_custom_call.1}
  #allocation0 [shape = 'u32[]', space=smem, size = 0x4, offset = 0x4, fixed_abs, tag = 'smem constant byte address 0x4 - core index']
  #allocation1 [shape = 'u32[144,128]{1,0:T(1,128)}', space=vmem, size = 0x12000, scoped, tag = 'internal scratch']
  %s0 = inlined_call_operand.hbm [shape: bf16[128,128], index: 0, kind: input, shape index: {}]
  %s1 = inlined_call_operand.hbm [shape: bf16[128,128], index: 1, kind: input, shape index: {}]
  %s2 = inlined_call_operand.hbm [shape: bf16[128,128], index: 2, kind: input, shape index: {}]
  %s3 = inlined_call_operand.vmem [shape: f32[1,128], index: 3, kind: input, shape index: {}]
  %s4 = inlined_call_operand.hbm [shape: bf16[128,128], index: 4, kind: input, shape index: {}]
  %s5 = inlined_call_operand.vmem [shape: f32[1,128], index: 5, kind: input, shape index: {}]
  %s6 = inlined_call_operand.hbm [shape: f32[1,128], index: 6, kind: output, shape index: {}]
  %s7 = sld [smem:[#allocation0]]
  $region50: #{tpu_custom_call.1} parent=0
    _
  %s9 = ssub.s32 1, %s7
  %s10 = scalar_select 0, %s9, %s7
  $region1: #{tpu_custom_call.1} parent=0
    #allocation2 [shape = 'u8[32768]{0}', space=vmem, size = 0x8000, scoped, tag = 'input window, operand 0, single buffered']
    #allocation3 [shape = 's32[1]{0}', space=sflag, size = 0x4, scoped, tag = 'scoped memory for tpu_custom_call.1']
    #allocation4 [shape = 's32[1]{0}', space=sflag, size = 0x4, scoped, tag = 'scoped memory for tpu_custom_call.1']
    #allocation5 [shape = 'u8[32768]{0}', space=vmem, size = 0x8000, scoped, tag = 'input window, operand 1, single buffered']
    #allocation6 [shape = 's32[1]{0}', space=sflag, size = 0x4, scoped, tag = 'scoped memory for tpu_custom_call.1']
    #allocation7 [shape = 'u8[32768]{0}', space=vmem, size = 0x8000, scoped, tag = 'input window, operand 2, single buffered']
    #allocation8 [shape = 'u8[32768]{0}', space=vmem, size = 0x8000, scoped, tag = 'input window, operand 4, single buffered']
    #allocation9 [shape = 's32[1]{0}', space=sflag, size = 0x4, scoped, tag = 'scoped memory for tpu_custom_call.1']
    #allocation10 [shape = 'u8[512]{0}', space=vmem, size = 0x400, scoped, tag = 'output window, operand 0, single buffered']
    %11 = vsyncpa [#allocation3], 0
    %12 = vsyncpa [#allocation6], 0
    %13 = vsyncpa [#allocation9], 0
    %14 = vsyncpa [#allocation4], 0
    // Predicated region
    $region2: #{tpu_custom_call.1} parent=1 // pred_check
      _
    $region3: #{tpu_custom_call.1} parent=1 // pred_check_branch
      %16 = sbr.rel (0) target = $region5
    $region4: #{tpu_custom_call.1} parent=1 // pred_region
      %s18 = ssub.s32 1024, 1024
      %19 = vsyncadd [#allocation3], %s18
      %s20 = sshll.u32 [#allocation2], 4
      %s21 = int_to_ptr.vmem [resolvable:$true] %s20
      %26 = dma.hbm_to_vmem [thread:$0]  %s0, 1024, %s21, [#allocation3], 64, 64, 4
    $region5: #{tpu_custom_call.1} parent=1 // pred_fallthru
      _
    // Predicated region
    $region6: #{tpu_custom_call.1} parent=1 // pred_check
      _
    $region7: #{tpu_custom_call.1} parent=1 // pred_check_branch
      %28 = sbr.rel (0) target = $region9
    $region8: #{tpu_custom_call.1} parent=1 // pred_region
      %s30 = ssub.s32 1024, 1024
      %31 = vsyncadd [#allocation6], %s30
      %s32 = sshll.u32 [#allocation5], 4
      %s33 = int_to_ptr.vmem [resolvable:$true] %s32
      %38 = dma.hbm_to_vmem [thread:$0]  %s1, 1024, %s33, [#allocation6], 64, 64, 4
    $region9: #{tpu_custom_call.1} parent=1 // pred_fallthru
      _
    // Predicated region
    $region10: #{tpu_custom_call.1} parent=1 // pred_check
      _
    $region11: #{tpu_custom_call.1} parent=1 // pred_check_branch
      %40 = sbr.rel (0) target = $region13
    $region12: #{tpu_custom_call.1} parent=1 // pred_region
      %s42 = ssub.s32 1024, 1024
      %43 = vsyncadd [#allocation6], %s42
      %s44 = sshll.u32 [#allocation7], 4
      %s45 = int_to_ptr.vmem [resolvable:$true] %s44
      %50 = dma.hbm_to_vmem [thread:$0]  %s2, 1024, %s45, [#allocation6], 64, 64, 4
    $region13: #{tpu_custom_call.1} parent=1 // pred_fallthru
      _
    // Predicated region
    $region14: #{tpu_custom_call.1} parent=1 // pred_check
      _
    $region15: #{tpu_custom_call.1} parent=1 // pred_check_branch
      %52 = sbr.rel (0) target = $region17
    $region16: #{tpu_custom_call.1} parent=1 // pred_region
      _
    $region17: #{tpu_custom_call.1} parent=1 // pred_fallthru
      _
    // Predicated region
    $region18: #{tpu_custom_call.1} parent=1 // pred_check
      _
    $region19: #{tpu_custom_call.1} parent=1 // pred_check_branch
      %54 = sbr.rel (0) target = $region21
    $region20: #{tpu_custom_call.1} parent=1 // pred_region
      %s56 = ssub.s32 1024, 1024
      %57 = vsyncadd [#allocation9], %s56
      %s58 = sshll.u32 [#allocation8], 4
      %s59 = int_to_ptr.vmem [resolvable:$true] %s58
      %64 = dma.hbm_to_vmem [thread:$0]  %s4, 1024, %s59, [#allocation9], 64, 64, 4
    $region21: #{tpu_custom_call.1} parent=1 // pred_fallthru
      _
    // Predicated region
    $region22: #{tpu_custom_call.1} parent=1 // pred_check
      _
    $region23: #{tpu_custom_call.1} parent=1 // pred_check_branch
      %66 = sbr.rel (0) target = $region25
    $region24: #{tpu_custom_call.1} parent=1 // pred_region
      _
    $region25: #{tpu_custom_call.1} parent=1 // pred_fallthru
      _
    // Predicated region
    $region26: #{tpu_custom_call.1} parent=1 // pred_check
      _
    $region27: #{tpu_custom_call.1} parent=1 // pred_check_branch
      %68 = sbr.rel (0) target = $region29
    $region28: #{tpu_custom_call.1} parent=1 // pred_region
      %69 = dma.done [#allocation3], 1024
    $region29: #{tpu_custom_call.1} parent=1 // pred_fallthru
      _
    // Predicated region
    $region30: #{tpu_custom_call.1} parent=1 // pred_check
      _
    $region31: #{tpu_custom_call.1} parent=1 // pred_check_branch
      %71 = sbr.rel (0) target = $region33
    $region32: #{tpu_custom_call.1} parent=1 // pred_region
      %72 = dma.done [#allocation6], 1024
    $region33: #{tpu_custom_call.1} parent=1 // pred_fallthru
      _
    // Predicated region
    $region34: #{tpu_custom_call.1} parent=1 // pred_check
      _
    $region35: #{tpu_custom_call.1} parent=1 // pred_check_branch
      %74 = sbr.rel (0) target = $region37
    $region36: #{tpu_custom_call.1} parent=1 // pred_region
      %75 = dma.done [#allocation6], 1024
    $region37: #{tpu_custom_call.1} parent=1 // pred_fallthru
      _
    // Predicated region
    $region38: #{tpu_custom_call.1} parent=1 // pred_check
      _
    $region39: #{tpu_custom_call.1} parent=1 // pred_check_branch
      %77 = sbr.rel (0) target = $region41
    $region40: #{tpu_custom_call.1} parent=1 // pred_region
      %78 = dma.done [#allocation9], 1024
    $region41: #{tpu_custom_call.1} parent=1 // pred_fallthru
      _
    %v80 = vld [vmem:[#allocation2] sm:$0xf]
    %v81 = vld [vmem:[#allocation2 + $0x4] sm:$0xf]
    %v82 = vld [vmem:[#allocation2 + $0x8] sm:$0xf]
    %v83 = vld [vmem:[#allocation2 + $0xc] sm:$0xf]
    %v84 = vld [vmem:[#allocation2 + $0x10] sm:$0xf]
    %v85 = vld [vmem:[#allocation2 + $0x14] sm:$0xf]
    %v86 = vld [vmem:[#allocation2 + $0x18] sm:$0xf]
    %v87 = vld [vmem:[#allocation2 + $0x1c] sm:$0xf]
    %v88 = vld [vmem:[#allocation2 + $0x20] sm:$0xf]
    %v89 = vld [vmem:[#allocation2 + $0x24] sm:$0xf]
    %v90 = vld [vmem:[#allocation2 + $0x28] sm:$0xf]
    %v91 = vld [vmem:[#allocation2 + $0x2c] sm:$0xf]
    %v92 = vld [vmem:[#allocation2 + $0x30] sm:$0xf]
    %v93 = vld [vmem:[#allocation2 + $0x34] sm:$0xf]
    %v94 = vld [vmem:[#allocation2 + $0x38] sm:$0xf]
    %v95 = vld [vmem:[#allocation2 + $0x3c] sm:$0xf]
    %v96 = vld [vmem:[#allocation5] sm:$0xf]
    %v97 = vld [vmem:[#allocation5 + $0x4] sm:$0xf]
    %v98 = vld [vmem:[#allocation5 + $0x8] sm:$0xf]
    %v99 = vld [vmem:[#allocation5 + $0xc] sm:$0xf]
    %v100 = vld [vmem:[#allocation5 + $0x10] sm:$0xf]
    %v101 = vld [vmem:[#allocation5 + $0x14] sm:$0xf]
    %v102 = vld [vmem:[#allocation5 + $0x18] sm:$0xf]
    %v103 = vld [vmem:[#allocation5 + $0x1c] sm:$0xf]
    %v104 = vld [vmem:[#allocation5 + $0x20] sm:$0xf]
    %v105 = vld [vmem:[#allocation5 + $0x24] sm:$0xf]
    %v106 = vld [vmem:[#allocation5 + $0x28] sm:$0xf]
    %v107 = vld [vmem:[#allocation5 + $0x2c] sm:$0xf]
    %v108 = vld [vmem:[#allocation5 + $0x30] sm:$0xf]
    %v109 = vld [vmem:[#allocation5 + $0x34] sm:$0xf]
    %v110 = vld [vmem:[#allocation5 + $0x38] sm:$0xf]
    %v111 = vld [vmem:[#allocation5 + $0x3c] sm:$0xf]
    %v112 = vld [vmem:[#allocation7] sm:$0xf]
    %v113 = vld [vmem:[#allocation7 + $0x4] sm:$0xf]
    %v114 = vld [vmem:[#allocation7 + $0x8] sm:$0xf]
    %v115 = vld [vmem:[#allocation7 + $0xc] sm:$0xf]
    %v116 = vld [vmem:[#allocation7 + $0x10] sm:$0xf]
    %v117 = vld [vmem:[#allocation7 + $0x14] sm:$0xf]
    %v118 = vld [vmem:[#allocation7 + $0x18] sm:$0xf]
    %v119 = vld [vmem:[#allocation7 + $0x1c] sm:$0xf]
    %v120 = vld [vmem:[#allocation7 + $0x20] sm:$0xf]
    %v121 = vld [vmem:[#allocation7 + $0x24] sm:$0xf]
    %v122 = vld [vmem:[#allocation7 + $0x28] sm:$0xf]
    %v123 = vld [vmem:[#allocation7 + $0x2c] sm:$0xf]
    %v124 = vld [vmem:[#allocation7 + $0x30] sm:$0xf]
    %v125 = vld [vmem:[#allocation7 + $0x34] sm:$0xf]
    %v126 = vld [vmem:[#allocation7 + $0x38] sm:$0xf]
    %v127 = vld [vmem:[#allocation7 + $0x3c] sm:$0xf]
    %v128 = vld [vmem:[%s3] sm:$0x1]
    %v129 = vld [vmem:[#allocation8] sm:$0xf]
    %v130 = vld [vmem:[#allocation8 + $0x4] sm:$0xf]
    %v131 = vld [vmem:[#allocation8 + $0x8] sm:$0xf]
    %v132 = vld [vmem:[#allocation8 + $0xc] sm:$0xf]
    %v133 = vld [vmem:[#allocation8 + $0x10] sm:$0xf]
    %v134 = vld [vmem:[#allocation8 + $0x14] sm:$0xf]
    %v135 = vld [vmem:[#allocation8 + $0x18] sm:$0xf]
    %v136 = vld [vmem:[#allocation8 + $0x1c] sm:$0xf]
    %v137 = vld [vmem:[#allocation8 + $0x20] sm:$0xf]
    %v138 = vld [vmem:[#allocation8 + $0x24] sm:$0xf]
    %v139 = vld [vmem:[#allocation8 + $0x28] sm:$0xf]
    %v140 = vld [vmem:[#allocation8 + $0x2c] sm:$0xf]
    %v141 = vld [vmem:[#allocation8 + $0x30] sm:$0xf]
    %v142 = vld [vmem:[#allocation8 + $0x34] sm:$0xf]
    %v143 = vld [vmem:[#allocation8 + $0x38] sm:$0xf]
    %v144 = vld [vmem:[#allocation8 + $0x3c] sm:$0xf]
    %v145 = vld [vmem:[%s5] sm:$0x1]
    %v162 = vunpack.c.l.b16 %v80
    %v163 = vunpack.c.l.b16 %v81
    %v164 = vunpack.c.l.b16 %v82
    %v165 = vunpack.c.l.b16 %v83
    %v166 = vunpack.c.l.b16 %v84
    %v167 = vunpack.c.l.b16 %v85
    %v168 = vunpack.c.l.b16 %v86
    %v169 = vunpack.c.l.b16 %v87
    %v170 = vunpack.c.l.b16 %v88
    %v171 = vunpack.c.l.b16 %v89
    %v172 = vunpack.c.l.b16 %v90
    %v173 = vunpack.c.l.b16 %v91
    %v174 = vunpack.c.l.b16 %v92
    %v175 = vunpack.c.l.b16 %v93
    %v176 = vunpack.c.l.b16 %v94
    %v177 = vunpack.c.l.b16 %v95
    %v178 = vpack.c.b16 %v163, %v162
    %v179 = vpack.c.b16 %v165, %v164
    %v180 = vpack.c.b16 %v167, %v166
    %v181 = vpack.c.b16 %v169, %v168
    %v182 = vpack.c.b16 %v171, %v170
    %v183 = vpack.c.b16 %v173, %v172
    %v184 = vpack.c.b16 %v175, %v174
    %v185 = vpack.c.b16 %v177, %v176
    %v210 = vunpack.c.l.b16 %v96
    %v211 = vunpack.c.l.b16 %v97
    %v212 = vunpack.c.l.b16 %v98
    %v213 = vunpack.c.l.b16 %v99
    %v214 = vunpack.c.l.b16 %v100
    %v215 = vunpack.c.l.b16 %v101
    %v216 = vunpack.c.l.b16 %v102
    %v217 = vunpack.c.l.b16 %v103
    %v218 = vunpack.c.l.b16 %v104
    %v219 = vunpack.c.l.b16 %v105
    %v220 = vunpack.c.l.b16 %v106
    %v221 = vunpack.c.l.b16 %v107
    %v222 = vunpack.c.l.b16 %v108
    %v223 = vunpack.c.l.b16 %v109
    %v224 = vunpack.c.l.b16 %v110
    %v225 = vunpack.c.l.b16 %v111
    %v226 = vpack.c.b16 %v211, %v210
    %v227 = vpack.c.b16 %v213, %v212
    %v228 = vpack.c.b16 %v215, %v214
    %v229 = vpack.c.b16 %v217, %v216
    %v230 = vpack.c.b16 %v219, %v218
    %v231 = vpack.c.b16 %v221, %v220
    %v232 = vpack.c.b16 %v223, %v222
    %v233 = vpack.c.b16 %v225, %v224
    %242 = vmatprep.subr.bf16.mxu0 0
    %243 = vmatpush1.bf16.msra.mxu0 %v226
    %244 = vmatprep.subr.bf16.mxu0 0
    %245 = vmatpush1.bf16.msra.mxu0 %v227
    %246 = vmatprep.subr.bf16.mxu0 0
    %247 = vmatpush1.bf16.msra.mxu0 %v228
    %248 = vmatprep.subr.bf16.mxu0 0
    %249 = vmatpush1.bf16.msra.mxu0 %v229
    %250 = vmatprep.subr.bf16.mxu0 0
    %251 = vmatpush1.bf16.msra.mxu0 %v230
    %252 = vmatprep.subr.bf16.mxu0 0
    %253 = vmatpush1.bf16.msra.mxu0 %v231
    %254 = vmatprep.subr.bf16.mxu0 0
    %255 = vmatpush1.bf16.msra.mxu0 %v232
    %256 = vmatprep.subr.bf16.mxu0 0
    %257 = vmatpush1.bf16.msra.mxu0 %v233
    %258 = vmatprep.subr.bf16.mxu0 0
    %259 = vmatpush1.bf16.msra.mxu0 0
    %260 = vmatprep.subr.bf16.mxu0 0
    %261 = vmatpush1.bf16.msra.mxu0 0
    %262 = vmatprep.subr.bf16.mxu0 0
    %263 = vmatpush1.bf16.msra.mxu0 0
    %264 = vmatprep.subr.bf16.mxu0 0
    %265 = vmatpush1.bf16.msra.mxu0 0
    %266 = vmatprep.subr.bf16.mxu0 0
    %267 = vmatpush1.bf16.msra.mxu0 0
    %268 = vmatprep.subr.bf16.mxu0 0
    %269 = vmatpush1.bf16.msra.mxu0 0
    %270 = vmatprep.subr.bf16.mxu0 0
    %271 = vmatpush1.bf16.msra.mxu0 0
    %272 = vmatprep.subr.bf16.mxu0 0
    %273 = vmatpush1.bf16.msra.mxu0 0
    %274 = vmatprep.mubr.bf16.mxu0 0
    %275 = vmatmul.mubr.bf16.gmra.mrb[0].mxu0 %v178
    %v276 = vpop.f32.mrb[0].mxu0
    %v277 = vadd.f32 0.0, %v276
    %v278 = vpop.f32.mrb[0].mxu0
    %v279 = vpop.f32.mrb[0].mxu0
    %v280 = vadd.f32 0.0, %v279
    %v281 = vpop.f32.mrb[0].mxu0
    %282 = vmatprep.mubr.bf16.mxu0 0
    %283 = vmatmul.mubr.bf16.gmra.mrb[0].mxu0 %v179
    %v284 = vpop.f32.mrb[0].mxu0
    %v285 = vadd.f32 0.0, %v284
    %v286 = vpop.f32.mrb[0].mxu0
    %v287 = vpop.f32.mrb[0].mxu0
    %v288 = vadd.f32 0.0, %v287
    %v289 = vpop.f32.mrb[0].mxu0
    %290 = vmatprep.mubr.bf16.mxu0 0
    %291 = vmatmul.mubr.bf16.gmra.mrb[0].mxu0 %v180
    %v292 = vpop.f32.mrb[0].mxu0
    %v293 = vadd.f32 0.0, %v292
    %v294 = vpop.f32.mrb[0].mxu0
    %v295 = vpop.f32.mrb[0].mxu0
    %v296 = vadd.f32 0.0, %v295
    %v297 = vpop.f32.mrb[0].mxu0
    %298 = vmatprep.mubr.bf16.mxu0 0
    %299 = vmatmul.mubr.bf16.gmra.mrb[0].mxu0 %v181
    %v300 = vpop.f32.mrb[0].mxu0
    %v301 = vadd.f32 0.0, %v300
    %v302 = vpop.f32.mrb[0].mxu0
    %v303 = vpop.f32.mrb[0].mxu0
    %v304 = vadd.f32 0.0, %v303
    %v305 = vpop.f32.mrb[0].mxu0
    %306 = vmatprep.mubr.bf16.mxu0 0
    %307 = vmatmul.mubr.bf16.gmra.mrb[0].mxu0 %v182
    %v308 = vpop.f32.mrb[0].mxu0
    %v309 = vadd.f32 0.0, %v308
    %v310 = vpop.f32.mrb[0].mxu0
    %v311 = vpop.f32.mrb[0].mxu0
    %v312 = vadd.f32 0.0, %v311
    %v313 = vpop.f32.mrb[0].mxu0
    %314 = vmatprep.mubr.bf16.mxu0 0
    %315 = vmatmul.mubr.bf16.gmra.mrb[0].mxu0 %v183
    %v316 = vpop.f32.mrb[0].mxu0
    %v317 = vadd.f32 0.0, %v316
    %v318 = vpop.f32.mrb[0].mxu0
    %v319 = vpop.f32.mrb[0].mxu0
    %v320 = vadd.f32 0.0, %v319
    %v321 = vpop.f32.mrb[0].mxu0
    %322 = vmatprep.mubr.bf16.mxu0 0
    %323 = vmatmul.mubr.bf16.gmra.mrb[0].mxu0 %v184
    %v324 = vpop.f32.mrb[0].mxu0
    %v325 = vadd.f32 0.0, %v324
    %v326 = vpop.f32.mrb[0].mxu0
    %v327 = vpop.f32.mrb[0].mxu0
    %v328 = vadd.f32 0.0, %v327
    %v329 = vpop.f32.mrb[0].mxu0
    %330 = vmatprep.mubr.bf16.mxu0 0
    %331 = vmatmul.mubr.bf16.gmra.mrb[0].mxu0 %v185
    %v332 = vpop.f32.mrb[0].mxu0
    %v333 = vadd.f32 0.0, %v332
    %v334 = vpop.f32.mrb[0].mxu0
    %v335 = vpop.f32.mrb[0].mxu0
    %v336 = vadd.f32 0.0, %v335
    %v337 = vpop.f32.mrb[0].mxu0
    %338 = vdwg.mxu0
    %v339 = vpack.c.bf16 %v280, %v277
    %v340 = vpack.c.bf16 %v288, %v285
    %v341 = vpack.c.bf16 %v296, %v293
    %v342 = vpack.c.bf16 %v304, %v301
    %v343 = vpack.c.bf16 %v312, %v309
    %v344 = vpack.c.bf16 %v320, %v317
    %v345 = vpack.c.bf16 %v328, %v325
    %v346 = vpack.c.bf16 %v336, %v333
    %v348 = vlaneseq
    %v349 = vshrl.u32 %v348, 7
    %v350 = vsub.s32 0, %v349
    %v351 = vrot.slane %v128, %v350
    %v369 = vunpack.c.l.b16 %v112
    %v370 = vunpack.c.l.b16 %v113
    %v371 = vunpack.c.l.b16 %v114
    %v372 = vunpack.c.l.b16 %v115
    %v373 = vunpack.c.l.b16 %v116
    %v374 = vunpack.c.l.b16 %v117
    %v375 = vunpack.c.l.b16 %v118
    %v376 = vunpack.c.l.b16 %v119
    %v377 = vunpack.c.l.b16 %v120
    %v378 = vunpack.c.l.b16 %v121
    %v379 = vunpack.c.l.b16 %v122
    %v380 = vunpack.c.l.b16 %v123
    %v381 = vunpack.c.l.b16 %v124
    %v382 = vunpack.c.l.b16 %v125
    %v383 = vunpack.c.l.b16 %v126
    %v384 = vunpack.c.l.b16 %v127
    %v385 = vpack.c.b16 %v370, %v369
    %v386 = vpack.c.b16 %v372, %v371
    %v387 = vpack.c.b16 %v374, %v373
    %v388 = vpack.c.b16 %v376, %v375
    %v389 = vpack.c.b16 %v378, %v377
    %v390 = vpack.c.b16 %v380, %v379
    %v391 = vpack.c.b16 %v382, %v381
    %v392 = vpack.c.b16 %v384, %v383
    %401 = vmatprep.subr.bf16.mxu0 0
    %402 = vmatpush1.bf16.msra.mxu0 %v385
    %403 = vmatprep.subr.bf16.mxu0 0
    %404 = vmatpush1.bf16.msra.mxu0 %v386
    %405 = vmatprep.subr.bf16.mxu0 0
    %406 = vmatpush1.bf16.msra.mxu0 %v387
    %407 = vmatprep.subr.bf16.mxu0 0
    %408 = vmatpush1.bf16.msra.mxu0 %v388
    %409 = vmatprep.subr.bf16.mxu0 0
    %410 = vmatpush1.bf16.msra.mxu0 %v389
    %411 = vmatprep.subr.bf16.mxu0 0
    %412 = vmatpush1.bf16.msra.mxu0 %v390
    %413 = vmatprep.subr.bf16.mxu0 0
    %414 = vmatpush1.bf16.msra.mxu0 %v391
    %415 = vmatprep.subr.bf16.mxu0 0
    %416 = vmatpush1.bf16.msra.mxu0 %v392
    %417 = vmatprep.subr.bf16.mxu0 0
    %418 = vmatpush1.bf16.msra.mxu0 0
    %419 = vmatprep.subr.bf16.mxu0 0
    %420 = vmatpush1.bf16.msra.mxu0 0
    %421 = vmatprep.subr.bf16.mxu0 0
    %422 = vmatpush1.bf16.msra.mxu0 0
    %423 = vmatprep.subr.bf16.mxu0 0
    %424 = vmatpush1.bf16.msra.mxu0 0
    %425 = vmatprep.subr.bf16.mxu0 0
    %426 = vmatpush1.bf16.msra.mxu0 0
    %427 = vmatprep.subr.bf16.mxu0 0
    %428 = vmatpush1.bf16.msra.mxu0 0
    %429 = vmatprep.subr.bf16.mxu0 0
    %430 = vmatpush1.bf16.msra.mxu0 0
    %431 = vmatprep.subr.bf16.mxu0 0
    %432 = vmatpush1.bf16.msra.mxu0 0
    %433 = vmatprep.mubr.bf16.mxu0 0
    %434 = vmatmul.mubr.bf16.gmra.mrb[0].mxu0 %v339
    %v435 = vpop.f32.mrb[0].mxu0
    %v436 = vadd.f32 %v351, %v435
    %v437 = vpop.f32.mrb[0].mxu0
    %v438 = vpop.f32.mrb[0].mxu0
    %v439 = vadd.f32 %v351, %v438
    %v440 = vpop.f32.mrb[0].mxu0
    %441 = vmatprep.mubr.bf16.mxu0 0
    %442 = vmatmul.mubr.bf16.gmra.mrb[0].mxu0 %v340
    %v443 = vpop.f32.mrb[0].mxu0
    %v444 = vadd.f32 %v351, %v443
    %v445 = vpop.f32.mrb[0].mxu0
    %v446 = vpop.f32.mrb[0].mxu0
    %v447 = vadd.f32 %v351, %v446
    %v448 = vpop.f32.mrb[0].mxu0
    %449 = vmatprep.mubr.bf16.mxu0 0
    %450 = vmatmul.mubr.bf16.gmra.mrb[0].mxu0 %v341
    %v451 = vpop.f32.mrb[0].mxu0
    %v452 = vadd.f32 %v351, %v451
    %v453 = vpop.f32.mrb[0].mxu0
    %v454 = vpop.f32.mrb[0].mxu0
    %v455 = vadd.f32 %v351, %v454
    %v456 = vpop.f32.mrb[0].mxu0
    %457 = vmatprep.mubr.bf16.mxu0 0
    %458 = vmatmul.mubr.bf16.gmra.mrb[0].mxu0 %v342
    %v459 = vpop.f32.mrb[0].mxu0
    %v460 = vadd.f32 %v351, %v459
    %v461 = vpop.f32.mrb[0].mxu0
    %v462 = vpop.f32.mrb[0].mxu0
    %v463 = vadd.f32 %v351, %v462
    %v464 = vpop.f32.mrb[0].mxu0
    %465 = vmatprep.mubr.bf16.mxu0 0
    %466 = vmatmul.mubr.bf16.gmra.mrb[0].mxu0 %v343
    %v467 = vpop.f32.mrb[0].mxu0
    %v468 = vadd.f32 %v351, %v467
    %v469 = vpop.f32.mrb[0].mxu0
    %v470 = vpop.f32.mrb[0].mxu0
    %v471 = vadd.f32 %v351, %v470
    %v472 = vpop.f32.mrb[0].mxu0
    %473 = vmatprep.mubr.bf16.mxu0 0
    %474 = vmatmul.mubr.bf16.gmra.mrb[0].mxu0 %v344
    %v475 = vpop.f32.mrb[0].mxu0
    %v476 = vadd.f32 %v351, %v475
    %v477 = vpop.f32.mrb[0].mxu0
    %v478 = vpop.f32.mrb[0].mxu0
    %v479 = vadd.f32 %v351, %v478
    %v480 = vpop.f32.mrb[0].mxu0
    %481 = vmatprep.mubr.bf16.mxu0 0
    %482 = vmatmul.mubr.bf16.gmra.mrb[0].mxu0 %v345
    %v483 = vpop.f32.mrb[0].mxu0
    %v484 = vadd.f32 %v351, %v483
    %v485 = vpop.f32.mrb[0].mxu0
    %v486 = vpop.f32.mrb[0].mxu0
    %v487 = vadd.f32 %v351, %v486
    %v488 = vpop.f32.mrb[0].mxu0
    %489 = vmatprep.mubr.bf16.mxu0 0
    %490 = vmatmul.mubr.bf16.gmra.mrb[0].mxu0 %v346
    %v491 = vpop.f32.mrb[0].mxu0
    %v492 = vadd.f32 %v351, %v491
    %v493 = vpop.f32.mrb[0].mxu0
    %v494 = vpop.f32.mrb[0].mxu0
    %v495 = vadd.f32 %v351, %v494
    %v496 = vpop.f32.mrb[0].mxu0
    %497 = vdwg.mxu0
    %v498 = vmax.f32 %v436, 0.0
    %v499 = vmax.f32 %v439, 0.0
    %v500 = vmax.f32 %v444, 0.0
    %v501 = vmax.f32 %v447, 0.0
    %v502 = vmax.f32 %v452, 0.0
    %v503 = vmax.f32 %v455, 0.0
    %v504 = vmax.f32 %v460, 0.0
    %v505 = vmax.f32 %v463, 0.0
    %v506 = vmax.f32 %v468, 0.0
    %v507 = vmax.f32 %v471, 0.0
    %v508 = vmax.f32 %v476, 0.0
    %v509 = vmax.f32 %v479, 0.0
    %v510 = vmax.f32 %v484, 0.0
    %v511 = vmax.f32 %v487, 0.0
    %v512 = vmax.f32 %v492, 0.0
    %v513 = vmax.f32 %v495, 0.0
    %v514 = vpack.c.bf16 %v499, %v498
    %v515 = vpack.c.bf16 %v501, %v500
    %v516 = vpack.c.bf16 %v503, %v502
    %v517 = vpack.c.bf16 %v505, %v504
    %v518 = vpack.c.bf16 %v507, %v506
    %v519 = vpack.c.bf16 %v509, %v508
    %v520 = vpack.c.bf16 %v511, %v510
    %v521 = vpack.c.bf16 %v513, %v512
    %522 = vmatprep.subr.bf16.mxu0 0
    %523 = vmatpush1.bf16.msra.mxu0 %v514
    %524 = vmatprep.subr.bf16.mxu0 0
    %525 = vmatpush1.bf16.msra.mxu0 %v515
    %526 = vmatprep.subr.bf16.mxu0 0
    %527 = vmatpush1.bf16.msra.mxu0 %v516
    %528 = vmatprep.subr.bf16.mxu0 0
    %529 = vmatpush1.bf16.msra.mxu0 %v517
    %530 = vmatprep.subr.bf16.mxu0 0
    %531 = vmatpush1.bf16.msra.mxu0 %v518
    %532 = vmatprep.subr.bf16.mxu0 0
    %533 = vmatpush1.bf16.msra.mxu0 %v519
    %534 = vmatprep.subr.bf16.mxu0 0
    %535 = vmatpush1.bf16.msra.mxu0 %v520
    %536 = vmatprep.subr.bf16.mxu0 0
    %537 = vmatpush1.bf16.msra.mxu0 %v521
    %538 = vmatprep.subr.bf16.mxu0 0
    %539 = vmatpush1.bf16.msra.mxu0 0
    %540 = vmatprep.subr.bf16.mxu0 0
    %541 = vmatpush1.bf16.msra.mxu0 0
    %542 = vmatprep.subr.bf16.mxu0 0
    %543 = vmatpush1.bf16.msra.mxu0 0
    %544 = vmatprep.subr.bf16.mxu0 0
    %545 = vmatpush1.bf16.msra.mxu0 0
    %546 = vmatprep.subr.bf16.mxu0 0
    %547 = vmatpush1.bf16.msra.mxu0 0
    %548 = vmatprep.subr.bf16.mxu0 0
    %549 = vmatpush1.bf16.msra.mxu0 0
    %550 = vmatprep.subr.bf16.mxu0 0
    %551 = vmatpush1.bf16.msra.mxu0 0
    %552 = vmatprep.subr.bf16.mxu0 0
    %553 = vmatpush1.bf16.msra.mxu0 0
    %554 = vmatprep.mubr.bf16.mxu0 0
    %555 = vmatmul.mubr.bf16.gmra.mrb[0].mxu0 %v178
    %v556 = vpop.f32.mrb[0].mxu0
    %v557 = vadd.f32 0.0, %v556
    %v558 = vpop.f32.mrb[0].mxu0
    %v559 = vpop.f32.mrb[0].mxu0
    %v560 = vadd.f32 0.0, %v559
    %v561 = vpop.f32.mrb[0].mxu0
    %562 = vmatprep.mubr.bf16.mxu0 0
    %563 = vmatmul.mubr.bf16.gmra.mrb[0].mxu0 %v179
    %v564 = vpop.f32.mrb[0].mxu0
    %v565 = vadd.f32 0.0, %v564
    %v566 = vpop.f32.mrb[0].mxu0
    %v567 = vpop.f32.mrb[0].mxu0
    %v568 = vadd.f32 0.0, %v567
    %v569 = vpop.f32.mrb[0].mxu0
    %570 = vmatprep.mubr.bf16.mxu0 0
    %571 = vmatmul.mubr.bf16.gmra.mrb[0].mxu0 %v180
    %v572 = vpop.f32.mrb[0].mxu0
    %v573 = vadd.f32 0.0, %v572
    %v574 = vpop.f32.mrb[0].mxu0
    %v575 = vpop.f32.mrb[0].mxu0
    %v576 = vadd.f32 0.0, %v575
    %v577 = vpop.f32.mrb[0].mxu0
    %578 = vmatprep.mubr.bf16.mxu0 0
    %579 = vmatmul.mubr.bf16.gmra.mrb[0].mxu0 %v181
    %v580 = vpop.f32.mrb[0].mxu0
    %v581 = vadd.f32 0.0, %v580
    %v582 = vpop.f32.mrb[0].mxu0
    %v583 = vpop.f32.mrb[0].mxu0
    %v584 = vadd.f32 0.0, %v583
    %v585 = vpop.f32.mrb[0].mxu0
    %586 = vmatprep.mubr.bf16.mxu0 0
    %587 = vmatmul.mubr.bf16.gmra.mrb[0].mxu0 %v182
    %v588 = vpop.f32.mrb[0].mxu0
    %v589 = vadd.f32 0.0, %v588
    %v590 = vpop.f32.mrb[0].mxu0
    %v591 = vpop.f32.mrb[0].mxu0
    %v592 = vadd.f32 0.0, %v591
    %v593 = vpop.f32.mrb[0].mxu0
    %594 = vmatprep.mubr.bf16.mxu0 0
    %595 = vmatmul.mubr.bf16.gmra.mrb[0].mxu0 %v183
    %v596 = vpop.f32.mrb[0].mxu0
    %v597 = vadd.f32 0.0, %v596
    %v598 = vpop.f32.mrb[0].mxu0
    %v599 = vpop.f32.mrb[0].mxu0
    %v600 = vadd.f32 0.0, %v599
    %v601 = vpop.f32.mrb[0].mxu0
    %602 = vmatprep.mubr.bf16.mxu0 0
    %603 = vmatmul.mubr.bf16.gmra.mrb[0].mxu0 %v184
    %v604 = vpop.f32.mrb[0].mxu0
    %v605 = vadd.f32 0.0, %v604
    %v606 = vpop.f32.mrb[0].mxu0
    %v607 = vpop.f32.mrb[0].mxu0
    %v608 = vadd.f32 0.0, %v607
    %v609 = vpop.f32.mrb[0].mxu0
    %610 = vmatprep.mubr.bf16.mxu0 0
    %611 = vmatmul.mubr.bf16.gmra.mrb[0].mxu0 %v185
    %v612 = vpop.f32.mrb[0].mxu0
    %v613 = vadd.f32 0.0, %v612
    %v614 = vpop.f32.mrb[0].mxu0
    %v615 = vpop.f32.mrb[0].mxu0
    %v616 = vadd.f32 0.0, %v615
    %v617 = vpop.f32.mrb[0].mxu0
    %618 = vdwg.mxu0
    %v619 = vpack.c.bf16 %v560, %v557
    %v620 = vpack.c.bf16 %v568, %v565
    %v621 = vpack.c.bf16 %v576, %v573
    %v622 = vpack.c.bf16 %v584, %v581
    %v623 = vpack.c.bf16 %v592, %v589
    %v624 = vpack.c.bf16 %v600, %v597
    %v625 = vpack.c.bf16 %v608, %v605
    %v626 = vpack.c.bf16 %v616, %v613
    %v628 = vlaneseq
    %v629 = vshrl.u32 %v628, 7
    %v630 = vsub.s32 0, %v629
    %v631 = vrot.slane %v145, %v630
    %v649 = vunpack.c.l.b16 %v129
    %v650 = vunpack.c.l.b16 %v130
    %v651 = vunpack.c.l.b16 %v131
    %v652 = vunpack.c.l.b16 %v132
    %v653 = vunpack.c.l.b16 %v133
    %v654 = vunpack.c.l.b16 %v134
    %v655 = vunpack.c.l.b16 %v135
    %v656 = vunpack.c.l.b16 %v136
    %v657 = vunpack.c.l.b16 %v137
    %v658 = vunpack.c.l.b16 %v138
    %v659 = vunpack.c.l.b16 %v139
    %v660 = vunpack.c.l.b16 %v140
    %v661 = vunpack.c.l.b16 %v141
    %v662 = vunpack.c.l.b16 %v142
    %v663 = vunpack.c.l.b16 %v143
    %v664 = vunpack.c.l.b16 %v144
    %v665 = vpack.c.b16 %v650, %v649
    %v666 = vpack.c.b16 %v652, %v651
    %v667 = vpack.c.b16 %v654, %v653
    %v668 = vpack.c.b16 %v656, %v655
    %v669 = vpack.c.b16 %v658, %v657
    %v670 = vpack.c.b16 %v660, %v659
    %v671 = vpack.c.b16 %v662, %v661
    %v672 = vpack.c.b16 %v664, %v663
    %681 = vmatprep.subr.bf16.mxu0 0
    %682 = vmatpush1.bf16.msra.mxu0 %v665
    %683 = vmatprep.subr.bf16.mxu0 0
    %684 = vmatpush1.bf16.msra.mxu0 %v666
    %685 = vmatprep.subr.bf16.mxu0 0
    %686 = vmatpush1.bf16.msra.mxu0 %v667
    %687 = vmatprep.subr.bf16.mxu0 0
    %688 = vmatpush1.bf16.msra.mxu0 %v668
    %689 = vmatprep.subr.bf16.mxu0 0
    %690 = vmatpush1.bf16.msra.mxu0 %v669
    %691 = vmatprep.subr.bf16.mxu0 0
    %692 = vmatpush1.bf16.msra.mxu0 %v670
    %693 = vmatprep.subr.bf16.mxu0 0
    %694 = vmatpush1.bf16.msra.mxu0 %v671
    %695 = vmatprep.subr.bf16.mxu0 0
    %696 = vmatpush1.bf16.msra.mxu0 %v672
    %697 = vmatprep.subr.bf16.mxu0 0
    %698 = vmatpush1.bf16.msra.mxu0 0
    %699 = vmatprep.subr.bf16.mxu0 0
    %700 = vmatpush1.bf16.msra.mxu0 0
    %701 = vmatprep.subr.bf16.mxu0 0
    %702 = vmatpush1.bf16.msra.mxu0 0
    %703 = vmatprep.subr.bf16.mxu0 0
    %704 = vmatpush1.bf16.msra.mxu0 0
    %705 = vmatprep.subr.bf16.mxu0 0
    %706 = vmatpush1.bf16.msra.mxu0 0
    %707 = vmatprep.subr.bf16.mxu0 0
    %708 = vmatpush1.bf16.msra.mxu0 0
    %709 = vmatprep.subr.bf16.mxu0 0
    %710 = vmatpush1.bf16.msra.mxu0 0
    %711 = vmatprep.subr.bf16.mxu0 0
    %712 = vmatpush1.bf16.msra.mxu0 0
    %713 = vmatprep.mubr.bf16.mxu0 0
    %714 = vmatmul.mubr.bf16.gmra.mrb[0].mxu0 %v619
    %v715 = vpop.f32.mrb[0].mxu0
    %v716 = vadd.f32 %v631, %v715
    %v717 = vpop.f32.mrb[0].mxu0
    %v718 = vpop.f32.mrb[0].mxu0
    %v719 = vadd.f32 %v631, %v718
    %v720 = vpop.f32.mrb[0].mxu0
    %721 = vmatprep.mubr.bf16.mxu0 0
    %722 = vmatmul.mubr.bf16.gmra.mrb[0].mxu0 %v620
    %v723 = vpop.f32.mrb[0].mxu0
    %v724 = vadd.f32 %v631, %v723
    %v725 = vpop.f32.mrb[0].mxu0
    %v726 = vpop.f32.mrb[0].mxu0
    %v727 = vadd.f32 %v631, %v726
    %v728 = vpop.f32.mrb[0].mxu0
    %729 = vmatprep.mubr.bf16.mxu0 0
    %730 = vmatmul.mubr.bf16.gmra.mrb[0].mxu0 %v621
    %v731 = vpop.f32.mrb[0].mxu0
    %v732 = vadd.f32 %v631, %v731
    %v733 = vpop.f32.mrb[0].mxu0
    %v734 = vpop.f32.mrb[0].mxu0
    %v735 = vadd.f32 %v631, %v734
    %v736 = vpop.f32.mrb[0].mxu0
    %737 = vmatprep.mubr.bf16.mxu0 0
    %738 = vmatmul.mubr.bf16.gmra.mrb[0].mxu0 %v622
    %v739 = vpop.f32.mrb[0].mxu0
    %v740 = vadd.f32 %v631, %v739
    %v741 = vpop.f32.mrb[0].mxu0
    %v742 = vpop.f32.mrb[0].mxu0
    %v743 = vadd.f32 %v631, %v742
    %v744 = vpop.f32.mrb[0].mxu0
    %745 = vmatprep.mubr.bf16.mxu0 0
    %746 = vmatmul.mubr.bf16.gmra.mrb[0].mxu0 %v623
    %v747 = vpop.f32.mrb[0].mxu0
    %v748 = vadd.f32 %v631, %v747
    %v749 = vpop.f32.mrb[0].mxu0
    %v750 = vpop.f32.mrb[0].mxu0
    %v751 = vadd.f32 %v631, %v750
    %v752 = vpop.f32.mrb[0].mxu0
    %753 = vmatprep.mubr.bf16.mxu0 0
    %754 = vmatmul.mubr.bf16.gmra.mrb[0].mxu0 %v624
    %v755 = vpop.f32.mrb[0].mxu0
    %v756 = vadd.f32 %v631, %v755
    %v757 = vpop.f32.mrb[0].mxu0
    %v758 = vpop.f32.mrb[0].mxu0
    %v759 = vadd.f32 %v631, %v758
    %v760 = vpop.f32.mrb[0].mxu0
    %761 = vmatprep.mubr.bf16.mxu0 0
    %762 = vmatmul.mubr.bf16.gmra.mrb[0].mxu0 %v625
    %v763 = vpop.f32.mrb[0].mxu0
    %v764 = vadd.f32 %v631, %v763
    %v765 = vpop.f32.mrb[0].mxu0
    %v766 = vpop.f32.mrb[0].mxu0
    %v767 = vadd.f32 %v631, %v766
    %v768 = vpop.f32.mrb[0].mxu0
    %769 = vmatprep.mubr.bf16.mxu0 0
    %770 = vmatmul.mubr.bf16.gmra.mrb[0].mxu0 %v626
    %v771 = vpop.f32.mrb[0].mxu0
    %v772 = vadd.f32 %v631, %v771
    %v773 = vpop.f32.mrb[0].mxu0
    %v774 = vpop.f32.mrb[0].mxu0
    %v775 = vadd.f32 %v631, %v774
    %v776 = vpop.f32.mrb[0].mxu0
    %777 = vdwg.mxu0
    %v778 = vmax.f32 %v716, 0.0
    %v779 = vmax.f32 %v719, 0.0
    %v780 = vmax.f32 %v724, 0.0
    %v781 = vmax.f32 %v727, 0.0
    %v782 = vmax.f32 %v732, 0.0
    %v783 = vmax.f32 %v735, 0.0
    %v784 = vmax.f32 %v740, 0.0
    %v785 = vmax.f32 %v743, 0.0
    %v786 = vmax.f32 %v748, 0.0
    %v787 = vmax.f32 %v751, 0.0
    %v788 = vmax.f32 %v756, 0.0
    %v789 = vmax.f32 %v759, 0.0
    %v790 = vmax.f32 %v764, 0.0
    %v791 = vmax.f32 %v767, 0.0
    %v792 = vmax.f32 %v772, 0.0
    %v793 = vmax.f32 %v775, 0.0
    %v794 = vlaneseq
    %v795 = vshrl.u32 %v794, 7
    %v796 = vadd.s32 %v795, 8
    %v797 = vadd.s32 %v795, 16
    %v798 = vadd.s32 %v795, 24
    %v799 = vadd.s32 %v795, 32
    %v800 = vadd.s32 %v795, 40
    %v801 = vadd.s32 %v795, 48
    %v802 = vadd.s32 %v795, 56
    %v803 = vadd.s32 %v795, 64
    %v804 = vadd.s32 %v795, 72
    %v805 = vadd.s32 %v795, 80
    %v806 = vadd.s32 %v795, 88
    %v807 = vadd.s32 %v795, 96
    %v808 = vadd.s32 %v795, 104
    %v809 = vadd.s32 %v795, 112
    %v810 = vadd.s32 %v795, 120
    %vm811 = vcmp.lt.s32.totalorder %v795, 32
    %vm812 = vcmp.lt.s32.totalorder %v796, 32
    %vm813 = vcmp.lt.s32.totalorder %v797, 32
    %vm814 = vcmp.lt.s32.totalorder %v798, 32
    %vm815 = vcmp.lt.s32.totalorder %v799, 32
    %vm816 = vcmp.lt.s32.totalorder %v800, 32
    %vm817 = vcmp.lt.s32.totalorder %v801, 32
    %vm818 = vcmp.lt.s32.totalorder %v802, 32
    %vm819 = vcmp.lt.s32.totalorder %v803, 32
    %vm820 = vcmp.lt.s32.totalorder %v804, 32
    %vm821 = vcmp.lt.s32.totalorder %v805, 32
    %vm822 = vcmp.lt.s32.totalorder %v806, 32
    %vm823 = vcmp.lt.s32.totalorder %v807, 32
    %vm824 = vcmp.lt.s32.totalorder %v808, 32
    %vm825 = vcmp.lt.s32.totalorder %v809, 32
    %vm826 = vcmp.lt.s32.totalorder %v810, 32
    %v827 = vsel %vm811, %v778, 0.0
    %v828 = vsel %vm812, %v779, 0.0
    %v829 = vsel %vm813, %v780, 0.0
    %v830 = vsel %vm814, %v781, 0.0
    %v831 = vsel %vm815, %v782, 0.0
    %v832 = vsel %vm816, %v783, 0.0
    %v833 = vsel %vm817, %v784, 0.0
    %v834 = vsel %vm818, %v785, 0.0
    %v835 = vsel %vm819, %v786, 0.0
    %v836 = vsel %vm820, %v787, 0.0
    %v837 = vsel %vm821, %v788, 0.0
    %v838 = vsel %vm822, %v789, 0.0
    %v839 = vsel %vm823, %v790, 0.0
    %v840 = vsel %vm824, %v791, 0.0
    %v841 = vsel %vm825, %v792, 0.0
    %v842 = vsel %vm826, %v793, 0.0
    %v843 = vadd.f32 %v827, %v828
    %v844 = vadd.f32 %v843, %v829
    %v845 = vadd.f32 %v844, %v830
    %v846 = vadd.f32 %v845, %v831
    %v847 = vadd.f32 %v846, %v832
    %v848 = vadd.f32 %v847, %v833
    %v849 = vadd.f32 %v848, %v834
    %v850 = vadd.f32 %v849, %v835
    %v851 = vadd.f32 %v850, %v836
    %v852 = vadd.f32 %v851, %v837
    %v853 = vadd.f32 %v852, %v838
    %v854 = vadd.f32 %v853, %v839
    %v855 = vadd.f32 %v854, %v840
    %v856 = vadd.f32 %v855, %v841
    %v857 = vadd.f32 %v856, %v842
    %v858 = vrot.slane %v857, 4
    %v859 = vadd.f32 %v857, %v858
    %v860 = vrot.slane %v859, 2
    %v861 = vadd.f32 %v859, %v860
    %v862 = vrot.slane %v861, 1
    %v863 = vadd.f32 %v861, %v862
    %864 = vst [vmem:[#allocation10] sm:$0x1] %v863
    // Predicated region
    $region42: #{tpu_custom_call.1} parent=1 // pred_check
      _
    $region43: #{tpu_custom_call.1} parent=1 // pred_check_branch
      %866 = sbr.rel (0) target = $region45
    $region44: #{tpu_custom_call.1} parent=1 // pred_region
      %s868 = ssub.s32 16, 16
      %869 = vsyncadd [#allocation4], %s868
      %s871 = sshll.u32 [#allocation10], 4
      %s872 = int_to_ptr.vmem [resolvable:$true] %s871
      %874 = dma.vmem_to_hbm [thread:$0]  %s872, 16, %s6, [#allocation4]
    $region45: #{tpu_custom_call.1} parent=1 // pred_fallthru
      _
    // Predicated region
    $region46: #{tpu_custom_call.1} parent=1 // pred_check
      _
    $region47: #{tpu_custom_call.1} parent=1 // pred_check_branch
      %876 = sbr.rel (0) target = $region49
    $region48: #{tpu_custom_call.1} parent=1 // pred_region
      %877 = dma.done [#allocation4], 16
    $region49: #{tpu_custom_call.1} parent=1 // pred_fallthru
      _
    %878 = vsyncpa [#allocation3], 1
    %879 = vsyncpa [#allocation6], 1
    %880 = vsyncpa [#allocation9], 1
    %881 = vsyncpa [#allocation4], 1

</llo_original>
